<compile_context>
chip_gen: v5e
topology: v5e:2x2
jax: 0.10.0
libtpu: 0.0.40
codegen_flags: <defaults>
</compile_context>

<pallas_src>
import jax
import jax.numpy as jnp
from jax.experimental import pallas as pl
from jax.experimental.pallas import tpu as pltpu


def _film_kernel(scale_ref, shift_ref, x_ref, o_ref):
    # scale_ref, shift_ref: (t_r, 1) f32   per-row FiLM parameters
    # x_ref, o_ref:         (t_r, t_hw)    streaming tile
    x = x_ref[...].astype(jnp.float32)
    o_ref[...] = (x * scale_ref[...] + shift_ref[...]).astype(o_ref.dtype)


def _round_up(x, m):
    return ((x + m - 1) // m) * m


def _vmem_budget():
    """(max_block_bytes, vmem_limit_bytes) sized for this TPU generation."""
    phys = None
    try:
        phys = getattr(pltpu.get_tpu_info(), "vmem_capacity_bytes", None)
    except Exception:
        phys = None
    if phys is None:
        phys = 64 * 1024 * 1024              # conservative: v7x per-TC VMEM
    if phys >= 128 * 1024 * 1024:            # v5e / v6e: 128 MiB physical
        # 8 MiB blocks -> 2 bufs x (in + out) = 32 MiB; leave headroom.
        return 8 * 1024 * 1024, 48 * 1024 * 1024
    # v7x: 64 MiB physical -> 4 MiB blocks, 16 MiB double-buffered.
    return 4 * 1024 * 1024, 32 * 1024 * 1024


def _pick_tiles(nc, hw, itemsize, max_block_bytes):
    """Block shape (t_r, t_hw): sublane dim a multiple of 8, lane dim a
    multiple of 128 (or the full extent when smaller), sized to the budget."""
    # Lane (fast) axis first: as wide as the budget allows at 8 sublanes.
    if hw <= 128:
        t_hw = hw                                            # full extent
    else:
        cap = max(128, (max_block_bytes // (8 * itemsize)) // 128 * 128)
        t_hw = min(_round_up(hw, 128), cap)
    # Then grow the sublane axis with whatever budget remains.
    if nc <= 8:
        t_r = nc                                             # full extent
    else:
        cap = max(8, (max_block_bytes // (t_hw * itemsize)) // 8 * 8)
        t_r = min(_round_up(nc, 8), cap)
    return t_r, t_hw


def adaptive_layer_forward(x, style, weight, bias):
    """x: (N, C, H, W); style: (N, S); weight: (2C, S) torch layout; bias: (2C,)."""
    N, C, H, W = x.shape
    HW = H * W
    NC = N * C
    itemsize = jnp.dtype(x.dtype).itemsize

    # Tiny style Linear + FiLM-parameter prep in the wrapper (KBs of work;
    # keeps the hot loop free of MXU matmuls and XLU transposes).
    gb = jnp.dot(style.astype(jnp.float32),
                 weight.astype(jnp.float32).T) + bias.astype(jnp.float32)  # (N, 2C)
    scale = (gb[:, :C] + 1.0).reshape(NC, 1)        # (N*C, 1) f32, row = n*C + c
    shift = gb[:, C:].reshape(NC, 1)                # (N*C, 1) f32

    x2 = x.reshape(NC, HW)                          # free reshape, lanes = H*W

    max_block_bytes, vmem_limit = _vmem_budget()
    t_r, t_hw = _pick_tiles(NC, HW, itemsize, max_block_bytes)
    grid = (pl.cdiv(NC, t_r), pl.cdiv(HW, t_hw))    # ragged last tiles are fine

    out = pl.pallas_call(
        _film_kernel,
        out_shape=jax.ShapeDtypeStruct((NC, HW), x.dtype),
        grid_spec=pltpu.PrefetchScalarGridSpec(
            num_scalar_prefetch=0,
            grid=grid,
            in_specs=[
                pl.BlockSpec((t_r, 1), lambda i, j: (i, 0)),       # scale
                pl.BlockSpec((t_r, 1), lambda i, j: (i, 0)),       # shift
                pl.BlockSpec((t_r, t_hw), lambda i, j: (i, j)),    # x tile
            ],
            out_specs=pl.BlockSpec((t_r, t_hw), lambda i, j: (i, j)),
        ),
        compiler_params=pltpu.CompilerParams(
            dimension_semantics=("parallel", "parallel"),
            vmem_limit_bytes=vmem_limit,
        ),
        cost_estimate=pl.CostEstimate(
            flops=2 * NC * HW,                       # one FMA per element
            transcendentals=0,
            bytes_accessed=2 * NC * HW * itemsize,   # read x + write out
        ),
    )(scale, shift, x2)

    return out.reshape(N, C, H, W)                   # free reshape back to NCHW


def _reference_forward(x, style, weight, bias):
    """Pure-JAX reference mirroring the PyTorch module."""
    gb = style @ weight.T + bias                     # (N, 2C)
    C = x.shape[1]
    gamma = gb[:, :C][:, :, None, None]
    beta = gb[:, C:][:, :, None, None]
    return (gamma + 1.0) * x + beta


if __name__ == "__main__":
    key = jax.random.PRNGKey(0)
    kx, ks, kw = jax.random.split(key, 3)

    N, C, H, W = 2, 4, 16, 16
    style_dim = 8

    x = jax.random.normal(kx, (N, C, H, W), dtype=jnp.float32)
    style = jax.random.normal(ks, (N, style_dim), dtype=jnp.float32)

    # nn.Linear default weight init: uniform(-k, k), k = 1/sqrt(style_dim)
    bound = 1.0 / (style_dim ** 0.5)
    weight = jax.random.uniform(kw, (2 * C, style_dim), jnp.float32,
                                minval=-bound, maxval=bound)
    # AdaptiveLayer bias init: first C entries = 1, last C entries = 0
    bias = jnp.concatenate([jnp.ones((C,), jnp.float32),
                            jnp.zeros((C,), jnp.float32)])

    out = jax.block_until_ready(adaptive_layer_forward(x, style, weight, bias))
    ref = jax.block_until_ready(_reference_forward(x, style, weight, bias))

    assert out.shape == (N, C, H, W), out.shape
    assert jnp.allclose(out, ref, rtol=1e-5, atol=1e-5), "mismatch vs reference"

    print("KERNEL_OK")
</pallas_src>

<mosaic_0001>
module attributes {stable_mosaic.version = 11 : i64} {
  func.func @_film_kernel(%arg0: i32, %arg1: i32, %arg2: memref<8x1xf32, #tpu.memory_space<vmem>>, %arg3: memref<8x1xf32, #tpu.memory_space<vmem>>, %arg4: memref<8x256xf32, #tpu.memory_space<vmem>>, %arg5: memref<8x256xf32, #tpu.memory_space<vmem>>) attributes {dimension_semantics = [#tpu.dimension_semantics<parallel>, #tpu.dimension_semantics<parallel>], iteration_bounds = array<i64: 1, 1>, scalar_prefetch = 0 : i64, scratch_operands = 0 : i64, tpu.core_type = #tpu.core_type<tc>, window_params = [{transform_indices = @transform_0, window_bounds = array<i64: 8, 1>}, {transform_indices = @transform_1, window_bounds = array<i64: 8, 1>}, {transform_indices = @transform_2, window_bounds = array<i64: 8, 256>}, {transform_indices = @transform_3, window_bounds = array<i64: 8, 256>}]} {
    %c0 = arith.constant 0 : index
    %c0_0 = arith.constant 0 : index
    %0 = vector.load %arg4[%c0, %c0_0] : memref<8x256xf32, #tpu.memory_space<vmem>>, vector<8x256xf32>
    %c0_1 = arith.constant 0 : index
    %c0_2 = arith.constant 0 : index
    %1 = vector.load %arg2[%c0_1, %c0_2] : memref<8x1xf32, #tpu.memory_space<vmem>>, vector<8x1xf32>
    %2 = vector.broadcast %1 : vector<8x1xf32> to vector<8x256xf32>
    %3 = arith.mulf %0, %2 : vector<8x256xf32>
    %c0_3 = arith.constant 0 : index
    %c0_4 = arith.constant 0 : index
    %4 = vector.load %arg3[%c0_3, %c0_4] : memref<8x1xf32, #tpu.memory_space<vmem>>, vector<8x1xf32>
    %5 = vector.broadcast %4 : vector<8x1xf32> to vector<8x256xf32>
    %6 = arith.addf %3, %5 : vector<8x256xf32>
    %c0_5 = arith.constant 0 : index
    %c0_6 = arith.constant 0 : index
    %7 = vector.load %arg5[%c0_5, %c0_6] : memref<8x256xf32, #tpu.memory_space<vmem>>, vector<8x256xf32>
    tpu.vector_store %arg5[%c0_5, %c0_6], %6 {strides = array<i32>} : memref<8x256xf32, #tpu.memory_space<vmem>>, vector<8x256xf32>,
    return
  }
  func.func @transform_0(%arg0: i32, %arg1: i32) -> (i32, i32) {
    %c0_i32 = arith.constant 0 : i32
    %c0_i32_0 = arith.constant 0 : i32
    return %arg0, %c0_i32 : i32, i32
  }
  func.func @transform_1(%arg0: i32, %arg1: i32) -> (i32, i32) {
    %c0_i32 = arith.constant 0 : i32
    %c0_i32_0 = arith.constant 0 : i32
    return %arg0, %c0_i32 : i32, i32
  }
  func.func @transform_2(%arg0: i32, %arg1: i32) -> (i32, i32) {
    %c0_i32 = arith.constant 0 : i32
    return %arg0, %arg1 : i32, i32
  }
  func.func @transform_3(%arg0: i32, %arg1: i32) -> (i32, i32) {
    %c0_i32 = arith.constant 0 : i32
    return %arg0, %arg1 : i32, i32
  }
}

</mosaic_0001>

<llo_original>
// kernel: tpu_custom_call.1
$region0: #{tpu_custom_call.1}
  #allocation0 [shape = 'u32[]', space=smem, size = 0x4, offset = 0x4, fixed_abs, tag = 'smem constant byte address 0x4 - core index']
  #allocation1 [shape = 'u32[72,128]{1,0:T(1,128)}', space=vmem, size = 0x9000, scoped, tag = 'internal scratch']
  %s0 = inlined_call_operand.vmem [shape: f32[8,1], index: 0, kind: input, shape index: {}]
  %s1 = inlined_call_operand.vmem [shape: f32[8,1], index: 1, kind: input, shape index: {}]
  %s2 = inlined_call_operand.vmem [shape: f32[8,256], index: 2, kind: input, shape index: {}]
  %s3 = inlined_call_operand.hbm [shape: f32[8,256], index: 3, kind: output, shape index: {}]
  %s4 = sld [smem:[#allocation0]]
  $region22: #{tpu_custom_call.1} parent=0
    _
  %s6 = ssub.s32 1, %s4
  %s7 = scalar_select 0, %s6, %s4
  $region1: #{tpu_custom_call.1} parent=0
    #allocation2 [shape = 'u8[8192]{0}', space=vmem, size = 0x2000, scoped, tag = 'output window, operand 0, single buffered']
    #allocation3 [shape = 's32[1]{0}', space=sflag, size = 0x4, scoped, tag = 'scoped memory for tpu_custom_call.1']
    %8 = vsyncpa [#allocation3], 0
    // Predicated region
    $region2: #{tpu_custom_call.1} parent=1 // pred_check
      _
    $region3: #{tpu_custom_call.1} parent=1 // pred_check_branch
      %10 = sbr.rel (0) target = $region5
    $region4: #{tpu_custom_call.1} parent=1 // pred_region
      _
    $region5: #{tpu_custom_call.1} parent=1 // pred_fallthru
      _
    // Predicated region
    $region6: #{tpu_custom_call.1} parent=1 // pred_check
      _
    $region7: #{tpu_custom_call.1} parent=1 // pred_check_branch
      %12 = sbr.rel (0) target = $region9
    $region8: #{tpu_custom_call.1} parent=1 // pred_region
      _
    $region9: #{tpu_custom_call.1} parent=1 // pred_fallthru
      _
    // Predicated region
    $region10: #{tpu_custom_call.1} parent=1 // pred_check
      _
    $region11: #{tpu_custom_call.1} parent=1 // pred_check_branch
      %14 = sbr.rel (0) target = $region13
    $region12: #{tpu_custom_call.1} parent=1 // pred_region
      _
    $region13: #{tpu_custom_call.1} parent=1 // pred_fallthru
      _
    %v15 = vld [vmem:[%s2] sm:$0xff]
    %v16 = vld [vmem:[%s2 + $0x8] sm:$0xff]
    %v17 = vld [vmem:[%s0] sm:$0xff]
    %19 = vset.pattern.permute.xlu0 0
    %20 = vperm.xlu0 %19, %v17
    %v21 = vpop.permute.xlu0 %20
    %v23 = vmul.f32 %v15, %v21
    %v24 = vmul.f32 %v16, %v21
    %v25 = vld [vmem:[%s1] sm:$0xff]
    %27 = vset.pattern.permute.xlu0 0
    %28 = vperm.xlu0 %27, %v25
    %v29 = vpop.permute.xlu0 %28
    %v31 = vadd.f32 %v23, %v29
    %v32 = vadd.f32 %v24, %v29
    %33 = vst [vmem:[#allocation2] sm:$0xff] %v31
    %34 = vst [vmem:[#allocation2 + $0x8] sm:$0xff] %v32
    // Predicated region
    $region14: #{tpu_custom_call.1} parent=1 // pred_check
      _
    $region15: #{tpu_custom_call.1} parent=1 // pred_check_branch
      %36 = sbr.rel (0) target = $region17
    $region16: #{tpu_custom_call.1} parent=1 // pred_region
      %38 = vsyncadd [#allocation3], 0
      %s40 = sshll.u32 [#allocation2], 4
      %s41 = int_to_ptr.vmem [resolvable:$true] %s40
      %s42 = sshll.u32 %s3, 4
      %s43 = int_to_ptr.hbm [resolvable:$true] %s42
      %45 = dma.vmem_to_hbm [thread:$0]  %s41, 256, %s43, [#allocation3]
    $region17: #{tpu_custom_call.1} parent=1 // pred_fallthru
      _
    // Predicated region
    $region18: #{tpu_custom_call.1} parent=1 // pred_check
      _
    $region19: #{tpu_custom_call.1} parent=1 // pred_check_branch
      %47 = sbr.rel (0) target = $region21
    $region20: #{tpu_custom_call.1} parent=1 // pred_region
      %49 = dma.done [#allocation3], 256
    $region21: #{tpu_custom_call.1} parent=1 // pred_fallthru
      _
    %50 = vsyncpa [#allocation3], 1

</llo_original>
